<compile_context>
chip_gen: v6e
topology: v6e:2x2x1
jax: 0.10.0
libtpu: 0.0.40
codegen_flags: <defaults>
</compile_context>

<pallas_src>
import jax
import jax.numpy as jnp
from jax import lax
from jax.experimental import pallas as pl
from jax.experimental.pallas import tpu as pltpu


def _mlp_softmax_kernel(x_ref, w1_ref, b1_ref, w2_ref, b2_ref, w3_ref, b3_ref,
                        out_ref):
    # x_ref: (TB, F) f32 tile in its natural layout (fully contiguous row DMA).
    # Cast to bf16 on the VPU (free) and contract the F axis of BOTH operands:
    # the result is feature-major (H, TB) with batch on the lane axis, so every
    # intermediate and the final store are lane-dense, and the softmax
    # (PyTorch dim=1 == class axis) is a cheap sublane (XLU) reduce.
    x = x_ref[...].astype(jnp.bfloat16)                              # (TB, F)

    # layer1: W1 (H, F) contracted with x (TB, F) over F  ->  (H, TB)
    h = lax.dot_general(w1_ref[...], x, (((1,), (1,)), ((), ())),
                        preferred_element_type=jnp.float32)
    h = jnp.maximum(h + b1_ref[...], 0.0).astype(jnp.bfloat16)       # (H, TB)

    # layer2: W2 (H, H) @ h (H, TB)  ->  (H, TB)
    h = jnp.dot(w2_ref[...], h, preferred_element_type=jnp.float32)
    h = jnp.maximum(h + b2_ref[...], 0.0).astype(jnp.bfloat16)       # (H, TB)

    # layer3: W3 (C, H) @ h (H, TB)  ->  (C, TB)
    logits = jnp.dot(w3_ref[...], h,
                     preferred_element_type=jnp.float32) + b3_ref[...]

    # Softmax over the class axis (axis 0 here == PyTorch dim=1).
    # Padded batch columns are all-zero inputs -> finite logits -> harmless.
    m = jnp.max(logits, axis=0, keepdims=True)
    e = jnp.exp(logits - m)
    denom = jnp.sum(e, axis=0, keepdims=True)
    out_ref[...] = (e * pl.reciprocal(denom, approx=True)).astype(out_ref.dtype)


def health_predictor_forward(x, params, *, block_b=2048, class_major_output=False):
    """Forward pass.  x: (B, input_size) f32.

    params: (w1, b1, w2, b2, w3, b3) with w_i: (out, in), b_i: (out, 1)
    (PyTorch nn.Linear layout).

    Returns (B, num_classes) f32 probabilities, or the kernel-native class-major
    (num_classes, B) slab if class_major_output=True (lets the consumer fuse the
    transpose instead of paying an extra HBM pass over the output).
    """
    assert block_b % 128 == 0 and block_b >= 128, "block_b must be a multiple of 128"
    w1, b1, w2, b2, w3, b3 = params
    B, F = x.shape
    H = w1.shape[0]
    C = w3.shape[0]

    # bf16 weights (tiny, VMEM-resident); biases stay f32.
    w1b = w1.astype(jnp.bfloat16)
    w2b = w2.astype(jnp.bfloat16)
    w3b = w3.astype(jnp.bfloat16)

    # --- batch tiling -----------------------------------------------------
    # Work in 128-lane chunks.  TB is as large as block_b allows, but capped so
    # that n_blocks >= 2 whenever B > 128 (so the "parallel" grid axis can be
    # sharded across v7x's two TensorCores).
    n_chunks = pl.cdiv(B, 128)
    tb_chunks = min(block_b // 128, n_chunks)
    if n_chunks >= 2:
        tb_chunks = min(tb_chunks, pl.cdiv(n_chunks, 2))
    TB = tb_chunks * 128
    n_blocks = pl.cdiv(n_chunks, tb_chunks)
    Bp = n_blocks * TB

    # Pad the batch only when needed (zero rows flow through softmax harmlessly
    # and are sliced off below).
    xp = x if Bp == B else jnp.pad(x, ((0, Bp - B), (0, 0)))

    cost = pl.CostEstimate(
        flops=2 * Bp * (F * H + H * H + H * C),
        transcendentals=Bp * C,
        bytes_accessed=(Bp * F * 4 + C * Bp * 4
                        + (w1.size + w2.size + w3.size) * 2
                        + (b1.size + b2.size + b3.size) * 4),
    )

    def resident(a):
        # Constant index_map -> fetched once, VMEM-resident across the grid.
        # (pipeline_mode=pl.Buffered(1) would drop the second buffer; skipped for
        #  portability -- all weights + biases total only ~3 KiB.)
        return pl.BlockSpec(a.shape, lambda i: (0, 0))

    out_cb = pl.pallas_call(
        _mlp_softmax_kernel,
        out_shape=jax.ShapeDtypeStruct((C, Bp), jnp.float32),
        grid=(n_blocks,),
        in_specs=[
            pl.BlockSpec((TB, F), lambda i: (i, 0)),        # x streams, f32, contiguous
            resident(w1b), resident(b1),
            resident(w2b), resident(b2),
            resident(w3b), resident(b3),
        ],
        out_specs=pl.BlockSpec((C, TB), lambda i: (0, i)),  # lane-dense store
        compiler_params=pltpu.CompilerParams(
            dimension_semantics=("parallel",),              # megacore on v7x
        ),
        cost_estimate=cost,
    )(xp, w1b, b1, w2b, b2, w3b, b3)

    if class_major_output:
        return out_cb[:, :B]                                # (C, B): no transpose pass
    return out_cb[:, :B].T                                  # (B, C): PyTorch layout


def init_params(key, input_size, hidden_size, num_classes):
    """Deterministic init mimicking nn.Linear defaults (uniform +-1/sqrt(fan_in)).

    Weights stored PyTorch-style: W (out_features, in_features), b (out, 1).
    """
    ks = jax.random.split(key, 6)

    def linear(kw, kb, fan_in, fan_out):
        bound = 1.0 / (fan_in ** 0.5)
        w = jax.random.uniform(kw, (fan_out, fan_in), jnp.float32, -bound, bound)
        b = jax.random.uniform(kb, (fan_out, 1), jnp.float32, -bound, bound)
        return w, b

    w1, b1 = linear(ks[0], ks[1], input_size, hidden_size)
    w2, b2 = linear(ks[2], ks[3], hidden_size, hidden_size)
    w3, b3 = linear(ks[4], ks[5], hidden_size, num_classes)
    return (w1, b1, w2, b2, w3, b3)


def _reference(x, params):
    w1, b1, w2, b2, w3, b3 = params
    h = jnp.maximum(x @ w1.T + b1[:, 0], 0.0)
    h = jnp.maximum(h @ w2.T + b2[:, 0], 0.0)
    logits = h @ w3.T + b3[:, 0]
    return jax.nn.softmax(logits, axis=1)


if __name__ == "__main__":
    input_size, hidden_size, num_classes = 16, 32, 8

    key = jax.random.PRNGKey(0)
    k_x1, k_x2, k_p = jax.random.split(key, 3)
    params = init_params(k_p, input_size, hidden_size, num_classes)

    # 1) small batch: single block, TB rounded up to 128 (lane-dense store path).
    x_small = jax.random.normal(k_x1, (8, input_size), jnp.float32)
    out_small = jax.block_until_ready(health_predictor_forward(x_small, params))
    ref_small = _reference(x_small, params)
    assert out_small.shape == (8, num_classes)
    assert jnp.allclose(out_small, ref_small, atol=2e-2)
    assert jnp.allclose(jnp.sum(out_small, axis=1), 1.0, atol=5e-3)

    # 2) larger batch, default block_b: exercises the >=2-block cap + batch padding.
    x_big = jax.random.normal(k_x2, (600, input_size), jnp.float32)
    out_big = jax.block_until_ready(health_predictor_forward(x_big, params))
    ref_big = _reference(x_big, params)
    assert out_big.shape == (600, num_classes)
    assert jnp.allclose(out_big, ref_big, atol=2e-2)
    assert jnp.allclose(jnp.sum(out_big, axis=1), 1.0, atol=5e-3)

    # 3) explicit small tile (3-block grid) + class-major output (no transpose pass).
    out_cm = jax.block_until_ready(
        health_predictor_forward(x_big, params, block_b=256,
                                 class_major_output=True))
    assert out_cm.shape == (num_classes, 600)
    assert jnp.allclose(out_cm.T, ref_big, atol=2e-2)

    print("KERNEL_OK")
</pallas_src>

<mosaic_0001>
module attributes {stable_mosaic.version = 11 : i64} {
  func.func @_mlp_softmax_kernel(%arg0: i32, %arg1: memref<128x16xf32, #tpu.memory_space<vmem>>, %arg2: memref<32x16xbf16, #tpu.memory_space<vmem>>, %arg3: memref<32x1xf32, #tpu.memory_space<vmem>>, %arg4: memref<32x32xbf16, #tpu.memory_space<vmem>>, %arg5: memref<32x1xf32, #tpu.memory_space<vmem>>, %arg6: memref<8x32xbf16, #tpu.memory_space<vmem>>, %arg7: memref<8x1xf32, #tpu.memory_space<vmem>>, %arg8: memref<8x128xf32, #tpu.memory_space<vmem>>) attributes {dimension_semantics = [#tpu.dimension_semantics<parallel>], iteration_bounds = array<i64: 1>, scalar_prefetch = 0 : i64, scratch_operands = 0 : i64, tpu.core_type = #tpu.core_type<tc>, window_params = [{transform_indices = @transform_0, window_bounds = array<i64: 128, 16>}, {pipeline_mode = #tpu.pipeline_mode<synchronous>, transform_indices = @transform_1, window_bounds = array<i64: 32, 16>}, {pipeline_mode = #tpu.pipeline_mode<synchronous>, transform_indices = @transform_2, window_bounds = array<i64: 32, 1>}, {pipeline_mode = #tpu.pipeline_mode<synchronous>, transform_indices = @transform_3, window_bounds = array<i64: 32, 32>}, {pipeline_mode = #tpu.pipeline_mode<synchronous>, transform_indices = @transform_4, window_bounds = array<i64: 32, 1>}, {pipeline_mode = #tpu.pipeline_mode<synchronous>, transform_indices = @transform_5, window_bounds = array<i64: 8, 32>}, {pipeline_mode = #tpu.pipeline_mode<synchronous>, transform_indices = @transform_6, window_bounds = array<i64: 8, 1>}, {transform_indices = @transform_7, window_bounds = array<i64: 8, 128>}]} {
    %c0 = arith.constant 0 : index
    %c0_0 = arith.constant 0 : index
    %0 = vector.load %arg1[%c0, %c0_0] : memref<128x16xf32, #tpu.memory_space<vmem>>, vector<128x16xf32>
    %1 = arith.truncf %0 : vector<128x16xf32> to vector<128x16xbf16>
    %c0_1 = arith.constant 0 : index
    %c0_2 = arith.constant 0 : index
    %2 = vector.load %arg2[%c0_1, %c0_2] : memref<32x16xbf16, #tpu.memory_space<vmem>>, vector<32x16xbf16>
    %cst = arith.constant dense<0.000000e+00> : vector<32x128xf32>
    %3 = tpu.matmul %2, %1, %cst {dimension_numbers = #tpu.dot_dimension_numbers<[1], [1], [0], [0], [0, 0, 1, 0], [], []>} : vector<32x16xbf16>, vector<128x16xbf16>, vector<32x128xf32> -> vector<32x128xf32>
    %c0_3 = arith.constant 0 : index
    %c0_4 = arith.constant 0 : index
    %4 = vector.load %arg3[%c0_3, %c0_4] : memref<32x1xf32, #tpu.memory_space<vmem>>, vector<32x1xf32>
    %5 = vector.broadcast %4 : vector<32x1xf32> to vector<32x128xf32>
    %6 = arith.addf %3, %5 : vector<32x128xf32>
    %cst_5 = arith.constant 0.000000e+00 : f32
    %7 = vector.broadcast %cst_5 : f32 to vector<32x128xf32>
    %8 = arith.maximumf %6, %7 : vector<32x128xf32>
    %9 = arith.truncf %8 : vector<32x128xf32> to vector<32x128xbf16>
    %c0_6 = arith.constant 0 : index
    %c0_7 = arith.constant 0 : index
    %10 = vector.load %arg4[%c0_6, %c0_7] : memref<32x32xbf16, #tpu.memory_space<vmem>>, vector<32x32xbf16>
    %cst_8 = arith.constant dense<0.000000e+00> : vector<32x128xf32>
    %11 = tpu.matmul %10, %9, %cst_8 {dimension_numbers = #tpu.dot_dimension_numbers<[1], [0], [0], [1], [0, 0, 1, 1], [], []>} : vector<32x32xbf16>, vector<32x128xbf16>, vector<32x128xf32> -> vector<32x128xf32>
    %c0_9 = arith.constant 0 : index
    %c0_10 = arith.constant 0 : index
    %12 = vector.load %arg5[%c0_9, %c0_10] : memref<32x1xf32, #tpu.memory_space<vmem>>, vector<32x1xf32>
    %13 = vector.broadcast %12 : vector<32x1xf32> to vector<32x128xf32>
    %14 = arith.addf %11, %13 : vector<32x128xf32>
    %cst_11 = arith.constant 0.000000e+00 : f32
    %15 = vector.broadcast %cst_11 : f32 to vector<32x128xf32>
    %16 = arith.maximumf %14, %15 : vector<32x128xf32>
    %17 = arith.truncf %16 : vector<32x128xf32> to vector<32x128xbf16>
    %c0_12 = arith.constant 0 : index
    %c0_13 = arith.constant 0 : index
    %18 = vector.load %arg6[%c0_12, %c0_13] : memref<8x32xbf16, #tpu.memory_space<vmem>>, vector<8x32xbf16>
    %cst_14 = arith.constant dense<0.000000e+00> : vector<8x128xf32>
    %19 = tpu.matmul %18, %17, %cst_14 {dimension_numbers = #tpu.dot_dimension_numbers<[1], [0], [0], [1], [0, 0, 1, 1], [], []>} : vector<8x32xbf16>, vector<32x128xbf16>, vector<8x128xf32> -> vector<8x128xf32>
    %c0_15 = arith.constant 0 : index
    %c0_16 = arith.constant 0 : index
    %20 = vector.load %arg7[%c0_15, %c0_16] : memref<8x1xf32, #tpu.memory_space<vmem>>, vector<8x1xf32>
    %21 = vector.broadcast %20 : vector<8x1xf32> to vector<8x128xf32>
    %22 = arith.addf %19, %21 : vector<8x128xf32>
    %cst_17 = arith.constant dense<0xFF800000> : vector<128xf32>
    %23 = vector.multi_reduction <maximumf>, %22, %cst_17 [0] : vector<8x128xf32> to vector<128xf32>
    %24 = vector.shape_cast %23 : vector<128xf32> to vector<1x128xf32>
    %25 = vector.broadcast %24 : vector<1x128xf32> to vector<8x128xf32>
    %26 = arith.subf %22, %25 : vector<8x128xf32>
    %27 = math.exp %26 : vector<8x128xf32>
    %cst_18 = arith.constant dense<0.000000e+00> : vector<128xf32>
    %28 = vector.multi_reduction <add>, %27, %cst_18 [0] : vector<8x128xf32> to vector<128xf32>
    %29 = vector.shape_cast %28 : vector<128xf32> to vector<1x128xf32>
    %30 = tpu.reciprocal %29 {approx = true} : vector<1x128xf32> -> vector<1x128xf32>
    %31 = vector.broadcast %30 : vector<1x128xf32> to vector<8x128xf32>
    %32 = arith.mulf %27, %31 : vector<8x128xf32>
    %c0_19 = arith.constant 0 : index
    %c0_20 = arith.constant 0 : index
    %33 = vector.load %arg8[%c0_19, %c0_20] : memref<8x128xf32, #tpu.memory_space<vmem>>, vector<8x128xf32>
    tpu.vector_store %arg8[%c0_19, %c0_20], %32 {strides = array<i32>} : memref<8x128xf32, #tpu.memory_space<vmem>>, vector<8x128xf32>,
    return
  }
  func.func @transform_0(%arg0: i32) -> (i32, i32) {
    %c0_i32 = arith.constant 0 : i32
    %c0_i32_0 = arith.constant 0 : i32
    return %arg0, %c0_i32 : i32, i32
  }
  func.func @transform_1(%arg0: i32) -> (i32, i32) {
    %c0_i32 = arith.constant 0 : i32
    %c0_i32_0 = arith.constant 0 : i32
    %c0_i32_1 = arith.constant 0 : i32
    return %c0_i32, %c0_i32_0 : i32, i32
  }
  func.func @transform_2(%arg0: i32) -> (i32, i32) {
    %c0_i32 = arith.constant 0 : i32
    %c0_i32_0 = arith.constant 0 : i32
    %c0_i32_1 = arith.constant 0 : i32
    return %c0_i32, %c0_i32_0 : i32, i32
  }
  func.func @transform_3(%arg0: i32) -> (i32, i32) {
    %c0_i32 = arith.constant 0 : i32
    %c0_i32_0 = arith.constant 0 : i32
    %c0_i32_1 = arith.constant 0 : i32
    return %c0_i32, %c0_i32_0 : i32, i32
  }
  func.func @transform_4(%arg0: i32) -> (i32, i32) {
    %c0_i32 = arith.constant 0 : i32
    %c0_i32_0 = arith.constant 0 : i32
    %c0_i32_1 = arith.constant 0 : i32
    return %c0_i32, %c0_i32_0 : i32, i32
  }
  func.func @transform_5(%arg0: i32) -> (i32, i32) {
    %c0_i32 = arith.constant 0 : i32
    %c0_i32_0 = arith.constant 0 : i32
    %c0_i32_1 = arith.constant 0 : i32
    return %c0_i32, %c0_i32_0 : i32, i32
  }
  func.func @transform_6(%arg0: i32) -> (i32, i32) {
    %c0_i32 = arith.constant 0 : i32
    %c0_i32_0 = arith.constant 0 : i32
    %c0_i32_1 = arith.constant 0 : i32
    return %c0_i32, %c0_i32_0 : i32, i32
  }
  func.func @transform_7(%arg0: i32) -> (i32, i32) {
    %c0_i32 = arith.constant 0 : i32
    %c0_i32_0 = arith.constant 0 : i32
    return %c0_i32, %arg0 : i32, i32
  }
}

</mosaic_0001>

<llo_original>
// kernel: tpu_custom_call.1
$region0: #{tpu_custom_call.1}
  #allocation0 [shape = 'u32[]', space=smem, size = 0x4, offset = 0x4, fixed_abs, tag = 'smem constant byte address 0x4 - core index']
  #allocation1 [shape = 'u32[144,128]{1,0:T(1,128)}', space=vmem, size = 0x12000, scoped, tag = 'internal scratch']
  %s0 = inlined_call_operand.vmem [shape: f32[128,16], index: 0, kind: input, shape index: {}]
  %s1 = inlined_call_operand.vmem [shape: bf16[32,16], index: 1, kind: input, shape index: {}]
  %s2 = inlined_call_operand.vmem [shape: f32[32,1], index: 2, kind: input, shape index: {}]
  %s3 = inlined_call_operand.vmem [shape: bf16[32,32], index: 3, kind: input, shape index: {}]
  %s4 = inlined_call_operand.vmem [shape: f32[32,1], index: 4, kind: input, shape index: {}]
  %s5 = inlined_call_operand.vmem [shape: bf16[8,32], index: 5, kind: input, shape index: {}]
  %s6 = inlined_call_operand.vmem [shape: f32[8,1], index: 6, kind: input, shape index: {}]
  %s7 = inlined_call_operand.hbm [shape: f32[8,128], index: 7, kind: output, shape index: {}]
  %s8 = sld [smem:[#allocation0]]
  $region38: #{tpu_custom_call.1} parent=0
    _
  %s10 = ssub.s32 1, %s8
  %s11 = scalar_select 0, %s10, %s8
  $region1: #{tpu_custom_call.1} parent=0
    #allocation2 [shape = 'u8[4096]{0}', space=vmem, size = 0x1000, scoped, tag = 'output window, operand 0, single buffered']
    #allocation3 [shape = 's32[1]{0}', space=sflag, size = 0x4, scoped, tag = 'scoped memory for tpu_custom_call.1']
    %12 = vsyncpa [#allocation3], 0
    // Predicated region
    $region2: #{tpu_custom_call.1} parent=1 // pred_check
      _
    $region3: #{tpu_custom_call.1} parent=1 // pred_check_branch
      %14 = sbr.rel (0) target = $region5
    $region4: #{tpu_custom_call.1} parent=1 // pred_region
      _
    $region5: #{tpu_custom_call.1} parent=1 // pred_fallthru
      _
    // Predicated region
    $region6: #{tpu_custom_call.1} parent=1 // pred_check
      _
    $region7: #{tpu_custom_call.1} parent=1 // pred_check_branch
      %16 = sbr.rel (0) target = $region9
    $region8: #{tpu_custom_call.1} parent=1 // pred_region
      _
    $region9: #{tpu_custom_call.1} parent=1 // pred_fallthru
      _
    // Predicated region
    $region10: #{tpu_custom_call.1} parent=1 // pred_check
      _
    $region11: #{tpu_custom_call.1} parent=1 // pred_check_branch
      %18 = sbr.rel (0) target = $region13
    $region12: #{tpu_custom_call.1} parent=1 // pred_region
      _
    $region13: #{tpu_custom_call.1} parent=1 // pred_fallthru
      _
    // Predicated region
    $region14: #{tpu_custom_call.1} parent=1 // pred_check
      _
    $region15: #{tpu_custom_call.1} parent=1 // pred_check_branch
      %20 = sbr.rel (0) target = $region17
    $region16: #{tpu_custom_call.1} parent=1 // pred_region
      _
    $region17: #{tpu_custom_call.1} parent=1 // pred_fallthru
      _
    // Predicated region
    $region18: #{tpu_custom_call.1} parent=1 // pred_check
      _
    $region19: #{tpu_custom_call.1} parent=1 // pred_check_branch
      %22 = sbr.rel (0) target = $region21
    $region20: #{tpu_custom_call.1} parent=1 // pred_region
      _
    $region21: #{tpu_custom_call.1} parent=1 // pred_fallthru
      _
    // Predicated region
    $region22: #{tpu_custom_call.1} parent=1 // pred_check
      _
    $region23: #{tpu_custom_call.1} parent=1 // pred_check_branch
      %24 = sbr.rel (0) target = $region25
    $region24: #{tpu_custom_call.1} parent=1 // pred_region
      _
    $region25: #{tpu_custom_call.1} parent=1 // pred_fallthru
      _
    // Predicated region
    $region26: #{tpu_custom_call.1} parent=1 // pred_check
      _
    $region27: #{tpu_custom_call.1} parent=1 // pred_check_branch
      %26 = sbr.rel (0) target = $region29
    $region28: #{tpu_custom_call.1} parent=1 // pred_region
      _
    $region29: #{tpu_custom_call.1} parent=1 // pred_fallthru
      _
    %v28 = vld [vmem:[%s0] sm:$0xff]
    %v29 = vld [vmem:[%s0 + $0x8] sm:$0xff]
    %v30 = vld [vmem:[%s0 + $0x10] sm:$0xff]
    %v31 = vld [vmem:[%s0 + $0x18] sm:$0xff]
    %v32 = vld [vmem:[%s0 + $0x20] sm:$0xff]
    %v33 = vld [vmem:[%s0 + $0x28] sm:$0xff]
    %v34 = vld [vmem:[%s0 + $0x30] sm:$0xff]
    %v35 = vld [vmem:[%s0 + $0x38] sm:$0xff]
    %v36 = vld [vmem:[%s0 + $0x40] sm:$0xff]
    %v37 = vld [vmem:[%s0 + $0x48] sm:$0xff]
    %v38 = vld [vmem:[%s0 + $0x50] sm:$0xff]
    %v39 = vld [vmem:[%s0 + $0x58] sm:$0xff]
    %v40 = vld [vmem:[%s0 + $0x60] sm:$0xff]
    %v41 = vld [vmem:[%s0 + $0x68] sm:$0xff]
    %v42 = vld [vmem:[%s0 + $0x70] sm:$0xff]
    %v43 = vld [vmem:[%s0 + $0x78] sm:$0xff]
    %v44 = vpack.c.bf16 %v29, %v28
    %v45 = vpack.c.bf16 %v31, %v30
    %v46 = vpack.c.bf16 %v33, %v32
    %v47 = vpack.c.bf16 %v35, %v34
    %v48 = vpack.c.bf16 %v37, %v36
    %v49 = vpack.c.bf16 %v39, %v38
    %v50 = vpack.c.bf16 %v41, %v40
    %v51 = vpack.c.bf16 %v43, %v42
    %v52 = vld [vmem:[%s1] sm:$0xf]
    %v53 = vld [vmem:[%s1 + $0x4] sm:$0xf]
    %v54 = vld [vmem:[%s1 + $0x8] sm:$0xf]
    %v55 = vld [vmem:[%s1 + $0xc] sm:$0xf]
    %v56 = vld [vmem:[%s2] sm:$0xff]
    %v57 = vld [vmem:[%s2 + $0x8] sm:$0xff]
    %v58 = vld [vmem:[%s2 + $0x10] sm:$0xff]
    %v59 = vld [vmem:[%s2 + $0x18] sm:$0xff]
    %61 = vset.pattern.permute.xlu0 0
    %62 = vperm.xlu0 %61, %v56
    %v63 = vpop.permute.xlu0 %62
    %66 = vset.pattern.permute.xlu0 0
    %67 = vperm.xlu0 %66, %v57
    %v68 = vpop.permute.xlu0 %67
    %71 = vset.pattern.permute.xlu0 0
    %72 = vperm.xlu0 %71, %v58
    %v73 = vpop.permute.xlu0 %72
    %76 = vset.pattern.permute.xlu0 0
    %77 = vperm.xlu0 %76, %v59
    %v78 = vpop.permute.xlu0 %77
    %v84 = vunpack.c.l.b16 %v52
    %v85 = vunpack.c.l.b16 %v53
    %v86 = vunpack.c.l.b16 %v54
    %v87 = vunpack.c.l.b16 %v55
    %v88 = vpack.c.b16 %v85, %v84
    %v89 = vpack.c.b16 %v87, %v86
    %vm90 = vcmask 130048
    %v92 = vsel %vm90, %v88, 0
    %v95 = vsel %vm90, %v89, 0
    %v98 = vsel %vm90, %v44, 0
    %v101 = vsel %vm90, %v45, 0
    %v104 = vsel %vm90, %v46, 0
    %v107 = vsel %vm90, %v47, 0
    %v110 = vsel %vm90, %v48, 0
    %v113 = vsel %vm90, %v49, 0
    %v116 = vsel %vm90, %v50, 0
    %v119 = vsel %vm90, %v51, 0
    %121 = vmatprep.subr.bf16.mxu0 0
    %122 = vmatpush1.bf16.xpose.msra.mxu0 %v119
    %123 = vmatprep.subr.bf16.mxu0 0
    %124 = vmatpush1.bf16.xpose.msra.mxu0 %v116
    %125 = vmatprep.subr.bf16.mxu0 0
    %126 = vmatpush1.bf16.xpose.msra.mxu0 %v113
    %127 = vmatprep.subr.bf16.mxu0 0
    %128 = vmatpush1.bf16.xpose.msra.mxu0 %v110
    %129 = vmatprep.subr.bf16.mxu0 0
    %130 = vmatpush1.bf16.xpose.msra.mxu0 %v107
    %131 = vmatprep.subr.bf16.mxu0 0
    %132 = vmatpush1.bf16.xpose.msra.mxu0 %v104
    %133 = vmatprep.subr.bf16.mxu0 0
    %134 = vmatpush1.bf16.xpose.msra.mxu0 %v101
    %135 = vmatprep.subr.bf16.mxu0 0
    %136 = vmatpush1.bf16.xpose.msra.mxu0 %v98
    %137 = vmatprep.subr.bf16.mxu0 0
    %138 = vmatpush2.bf16.xpose.msra.mxu0 0
    %139 = vmatprep.subr.bf16.mxu0 0
    %140 = vmatpush2.bf16.xpose.msra.mxu0 0
    %141 = vmatprep.subr.bf16.mxu0 0
    %142 = vmatpush2.bf16.xpose.msra.mxu0 0
    %143 = vmatprep.subr.bf16.mxu0 0
    %144 = vmatpush2.bf16.xpose.msra.mxu0 0
    %145 = vmatprep.subr.bf16.mxu0 0
    %146 = vmatpush2.bf16.xpose.msra.mxu0 0
    %147 = vmatprep.subr.bf16.mxu0 0
    %148 = vmatpush2.bf16.xpose.msra.mxu0 0
    %149 = vmatprep.subr.bf16.mxu0 0
    %150 = vmatpush2.bf16.xpose.msra.mxu0 0
    %151 = vmatprep.subr.bf16.mxu0 0
    %152 = vmatpush2.bf16.xpose.msra.mxu0 0
    %153 = vmatprep.mubr.bf16.mxu0 0
    %154 = vmatmul.mubr.bf16.gmra.mxu0 %v92
    %v155 = vpop.f32.mrf.mxu0
    %v156 = vadd.f32 %v63, %v155
    %v157 = vpop.f32.mrf.mxu0
    %v158 = vpop.f32.mrf.mxu0
    %v159 = vadd.f32 %v68, %v158
    %v160 = vpop.f32.mrf.mxu0
    %161 = vmatprep.mubr.bf16.mxu0 0
    %162 = vmatmul.mubr.bf16.gmra.mxu0 %v95
    %v163 = vpop.f32.mrf.mxu0
    %v164 = vadd.f32 %v73, %v163
    %v165 = vpop.f32.mrf.mxu0
    %v166 = vpop.f32.mrf.mxu0
    %v167 = vadd.f32 %v78, %v166
    %v168 = vpop.f32.mrf.mxu0
    %169 = vdwg.mxu0
    %v170 = vmax.f32 %v156, 0.0
    %v171 = vmax.f32 %v159, 0.0
    %v172 = vmax.f32 %v164, 0.0
    %v173 = vmax.f32 %v167, 0.0
    %v174 = vpack.c.bf16 %v171, %v170
    %v175 = vpack.c.bf16 %v173, %v172
    %v176 = vld [vmem:[%s3] sm:$0xf]
    %v177 = vld [vmem:[%s3 + $0x4] sm:$0xf]
    %v178 = vld [vmem:[%s3 + $0x8] sm:$0xf]
    %v179 = vld [vmem:[%s3 + $0xc] sm:$0xf]
    %v180 = vld [vmem:[%s4] sm:$0xff]
    %v181 = vld [vmem:[%s4 + $0x8] sm:$0xff]
    %v182 = vld [vmem:[%s4 + $0x10] sm:$0xff]
    %v183 = vld [vmem:[%s4 + $0x18] sm:$0xff]
    %185 = vset.pattern.permute.xlu0 0
    %186 = vperm.xlu0 %185, %v180
    %v187 = vpop.permute.xlu0 %186
    %190 = vset.pattern.permute.xlu0 0
    %191 = vperm.xlu0 %190, %v181
    %v192 = vpop.permute.xlu0 %191
    %195 = vset.pattern.permute.xlu0 0
    %196 = vperm.xlu0 %195, %v182
    %v197 = vpop.permute.xlu0 %196
    %200 = vset.pattern.permute.xlu0 0
    %201 = vperm.xlu0 %200, %v183
    %v202 = vpop.permute.xlu0 %201
    %v208 = vunpack.c.l.b16 %v176
    %v209 = vunpack.c.l.b16 %v177
    %v210 = vunpack.c.l.b16 %v178
    %v211 = vunpack.c.l.b16 %v179
    %v212 = vpack.c.b16 %v209, %v208
    %v213 = vpack.c.b16 %v211, %v210
    %vm214 = vcmask 261120
    %v216 = vsel %vm214, %v212, 0
    %v219 = vsel %vm214, %v213, 0
    %221 = vmatprep.subr.bf16.mxu0 0
    %222 = vmatpush1.bf16.msra.mxu0 0
    %223 = vmatprep.subr.bf16.mxu0 0
    %224 = vmatpush1.bf16.msra.mxu0 0
    %225 = vmatprep.subr.bf16.mxu0 0
    %226 = vmatpush1.bf16.msra.mxu0 0
    %227 = vmatprep.subr.bf16.mxu0 0
    %228 = vmatpush1.bf16.msra.mxu0 0
    %229 = vmatprep.subr.bf16.mxu0 0
    %230 = vmatpush1.bf16.msra.mxu0 0
    %231 = vmatprep.subr.bf16.mxu0 0
    %232 = vmatpush1.bf16.msra.mxu0 0
    %233 = vmatprep.subr.bf16.mxu0 0
    %234 = vmatpush1.bf16.msra.mxu0 %v175
    %235 = vmatprep.subr.bf16.mxu0 0
    %236 = vmatpush1.bf16.msra.mxu0 %v174
    %237 = vmatprep.subr.bf16.mxu0 0
    %238 = vmatpush2.bf16.msra.mxu0 0
    %239 = vmatprep.subr.bf16.mxu0 0
    %240 = vmatpush2.bf16.msra.mxu0 0
    %241 = vmatprep.subr.bf16.mxu0 0
    %242 = vmatpush2.bf16.msra.mxu0 0
    %243 = vmatprep.subr.bf16.mxu0 0
    %244 = vmatpush2.bf16.msra.mxu0 0
    %245 = vmatprep.subr.bf16.mxu0 0
    %246 = vmatpush2.bf16.msra.mxu0 0
    %247 = vmatprep.subr.bf16.mxu0 0
    %248 = vmatpush2.bf16.msra.mxu0 0
    %249 = vmatprep.subr.bf16.mxu0 0
    %250 = vmatpush2.bf16.msra.mxu0 0
    %251 = vmatprep.subr.bf16.mxu0 0
    %252 = vmatpush2.bf16.msra.mxu0 0
    %253 = vmatprep.mubr.bf16.mxu0 0
    %254 = vmatmul.mubr.bf16.gmra.mxu0 %v216
    %v255 = vpop.f32.mrf.mxu0
    %v256 = vadd.f32 %v187, %v255
    %v257 = vpop.f32.mrf.mxu0
    %v258 = vpop.f32.mrf.mxu0
    %v259 = vadd.f32 %v192, %v258
    %v260 = vpop.f32.mrf.mxu0
    %261 = vmatprep.mubr.bf16.mxu0 0
    %262 = vmatmul.mubr.bf16.gmra.mxu0 %v219
    %v263 = vpop.f32.mrf.mxu0
    %v264 = vadd.f32 %v197, %v263
    %v265 = vpop.f32.mrf.mxu0
    %v266 = vpop.f32.mrf.mxu0
    %v267 = vadd.f32 %v202, %v266
    %v268 = vpop.f32.mrf.mxu0
    %269 = vdwg.mxu0
    %v270 = vmax.f32 %v256, 0.0
    %v271 = vmax.f32 %v259, 0.0
    %v272 = vmax.f32 %v264, 0.0
    %v273 = vmax.f32 %v267, 0.0
    %v274 = vpack.c.bf16 %v271, %v270
    %v275 = vpack.c.bf16 %v273, %v272
    %v276 = vld [vmem:[%s5] sm:$0xf]
    %v277 = vld [vmem:[%s6] sm:$0xff]
    %279 = vset.pattern.permute.xlu0 0
    %280 = vperm.xlu0 %279, %v277
    %v281 = vpop.permute.xlu0 %280
    %v284 = vsel %vm214, %v276, 0
    %286 = vmatprep.subr.bf16.mxu0 0
    %287 = vmatpush1.bf16.msra.mxu0 0
    %288 = vmatprep.subr.bf16.mxu0 0
    %289 = vmatpush1.bf16.msra.mxu0 0
    %290 = vmatprep.subr.bf16.mxu0 0
    %291 = vmatpush1.bf16.msra.mxu0 0
    %292 = vmatprep.subr.bf16.mxu0 0
    %293 = vmatpush1.bf16.msra.mxu0 0
    %294 = vmatprep.subr.bf16.mxu0 0
    %295 = vmatpush1.bf16.msra.mxu0 0
    %296 = vmatprep.subr.bf16.mxu0 0
    %297 = vmatpush1.bf16.msra.mxu0 0
    %298 = vmatprep.subr.bf16.mxu0 0
    %299 = vmatpush1.bf16.msra.mxu0 %v275
    %300 = vmatprep.subr.bf16.mxu0 0
    %301 = vmatpush1.bf16.msra.mxu0 %v274
    %302 = vmatprep.subr.bf16.mxu0 0
    %303 = vmatpush2.bf16.msra.mxu0 0
    %304 = vmatprep.subr.bf16.mxu0 0
    %305 = vmatpush2.bf16.msra.mxu0 0
    %306 = vmatprep.subr.bf16.mxu0 0
    %307 = vmatpush2.bf16.msra.mxu0 0
    %308 = vmatprep.subr.bf16.mxu0 0
    %309 = vmatpush2.bf16.msra.mxu0 0
    %310 = vmatprep.subr.bf16.mxu0 0
    %311 = vmatpush2.bf16.msra.mxu0 0
    %312 = vmatprep.subr.bf16.mxu0 0
    %313 = vmatpush2.bf16.msra.mxu0 0
    %314 = vmatprep.subr.bf16.mxu0 0
    %315 = vmatpush2.bf16.msra.mxu0 0
    %316 = vmatprep.subr.bf16.mxu0 0
    %317 = vmatpush2.bf16.msra.mxu0 0
    %318 = vmatprep.mubr.bf16.mxu0 0
    %319 = vmatmul.mubr.bf16.gmra.mxu0 %v284
    %v320 = vpop.f32.mrf.mxu0
    %v321 = vadd.f32 %v281, %v320
    %v322 = vpop.f32.mrf.mxu0
    %v323 = vpop.f32.mrf.mxu0
    %v324 = vpop.f32.mrf.mxu0
    %325 = vdwg.mxu0
    %v326 = vrot.slane %v321, 4
    %v327 = vmax.f32 %v321, %v326
    %v328 = vrot.slane %v327, 2
    %v329 = vmax.f32 %v327, %v328
    %v330 = vrot.slane %v329, 1
    %v331 = vmax.f32 %v329, %v330
    %v332 = vsub.f32 %v321, %v331
    %v333 = vmul.f32 %v332, 1.442695
    %v334 = vpow.pop %v333
    %v335 = vrot.slane %v334, 4
    %v336 = vadd.f32 %v334, %v335
    %v337 = vrot.slane %v336, 2
    %v338 = vadd.f32 %v336, %v337
    %v339 = vrot.slane %v338, 1
    %v340 = vadd.f32 %v338, %v339
    %v341 = vrcp.pop %v340
    %v342 = vmul.f32 %v334, %v341
    %343 = vst [vmem:[#allocation2] sm:$0xff] %v342
    // Predicated region
    $region30: #{tpu_custom_call.1} parent=1 // pred_check
      _
    $region31: #{tpu_custom_call.1} parent=1 // pred_check_branch
      %345 = sbr.rel (0) target = $region33
    $region32: #{tpu_custom_call.1} parent=1 // pred_region
      %s347 = ssub.s32 128, 128
      %348 = vsyncadd [#allocation3], %s347
      %s350 = sshll.u32 [#allocation2], 4
      %s351 = int_to_ptr.vmem [resolvable:$true] %s350
      %353 = dma.vmem_to_hbm [thread:$0]  %s351, 128, %s7, [#allocation3]
    $region33: #{tpu_custom_call.1} parent=1 // pred_fallthru
      _
    // Predicated region
    $region34: #{tpu_custom_call.1} parent=1 // pred_check
      _
    $region35: #{tpu_custom_call.1} parent=1 // pred_check_branch
      %355 = sbr.rel (0) target = $region37
    $region36: #{tpu_custom_call.1} parent=1 // pred_region
      %356 = dma.done [#allocation3], 128
    $region37: #{tpu_custom_call.1} parent=1 // pred_fallthru
      _
    %357 = vsyncpa [#allocation3], 1

</llo_original>
